<compile_context>
chip_gen: v7x
topology: tpu7x:2x2x1
jax: 0.10.0
libtpu: 0.0.40
codegen_flags: <defaults>
</compile_context>

<pallas_src>
import jax
import jax.numpy as jnp
from jax.experimental import pallas as pl
from jax.experimental.pallas import tpu as pltpu


def lstm_dense_kernel(x_ref, wih_ref, whh_ref, b_ref, wd_ref, bd_ref, out_ref):
    """Single-invocation LSTM + Linear, everything register-resident.

    x_ref   : (B, T, 1)  VMEM  batch-major input
    wih_ref : (1, 4H)    VMEM  W_ih^T (input_size == 1)
    whh_ref : (H, 4H)    VMEM  W_hh^T (bf16 by default; f32 for strict parity)
    b_ref   : (1, 4H)    VMEM  b_ih + b_hh
    wd_ref  : (1, H)     VMEM  dense weight
    bd_ref  : (1,)       SMEM  dense bias (scalar path)
    out_ref : (B, T)     VMEM  dense output slab (one store)
    """
    B, T, _ = x_ref.shape
    H = whh_ref.shape[0]

    # Hoisted input projection, register-resident:
    # gx[b, t, :] = x[b, t, 0] * W_ih^T + (b_ih + b_hh)   -> (B, T, 4H) = 2 f32 vregs.
    gx = x_ref[...] * wih_ref[...][None, :, :] + b_ref[...][None, :, :]

    whh = whh_ref[...]              # (H, 4H) loop-invariant MXU RHS (hoisted push)
    mx_dtype = whh.dtype            # bf16 (default) or f32 MXU operands
    wd = wd_ref[...]                # (1, H)
    bd = bd_ref[0]                  # scalar, read once

    h = jnp.zeros((B, H), jnp.float32)
    c = jnp.zeros((B, H), jnp.float32)
    ys = []
    # Statically unrolled recurrence (T=8): only the recurrent matmul + gate math sit on
    # the serial chain; the dense-head reduce per step is a side branch (XLU slack).
    for t in range(T):
        gates = gx[:, t, :] + jnp.dot(h.astype(mx_dtype), whh,
                                      preferred_element_type=jnp.float32)   # (B, 4H) f32
        # Two full-vreg EUP passes over all 4H lanes, then static lane slices.
        sig = jax.nn.sigmoid(gates)
        tnh = jnp.tanh(gates)
        i_g = sig[:, 0:H]
        f_g = sig[:, H:2 * H]
        g_g = tnh[:, 2 * H:3 * H]
        o_g = sig[:, 3 * H:4 * H]
        c = f_g * c + i_g * g_g                      # f32 state math
        h = o_g * jnp.tanh(c)
        ys.append(jnp.sum(h * wd, axis=-1, keepdims=True))   # (B, 1) dense head

    y = jnp.concatenate(ys, axis=1) + bd             # (B, T)
    out_ref[...] = y                                  # single lane-masked store


def prepare_params(params, matmul_dtype=jnp.bfloat16):
    """One-time parameter preprocessing (kept out of the per-call path)."""
    w_ih, w_hh, b_ih, b_hh, w_d, b_d = params
    H = w_hh.shape[1]
    wih_row = w_ih.T.astype(jnp.float32)                           # (1, 4H)
    whh_t = w_hh.T.astype(matmul_dtype)                            # (H, 4H)
    bias_row = (b_ih + b_hh).reshape(1, 4 * H).astype(jnp.float32)  # (1, 4H)
    wd_row = w_d.astype(jnp.float32)                               # (1, H)
    bd = b_d.reshape(1).astype(jnp.float32)                        # (1,)
    return (wih_row, whh_t, bias_row, wd_row, bd)


@jax.jit
def simple_model_forward(x, prepared):
    """x: (B, T, 1) float32, prepared = prepare_params(...) -> (B, T, 1) float32."""
    wih_row, whh_t, bias_row, wd_row, bd = prepared
    B, T, _ = x.shape

    vmem = pl.BlockSpec(memory_space=pltpu.MemorySpace.VMEM)
    smem = pl.BlockSpec(memory_space=pltpu.MemorySpace.SMEM)

    out_2d = pl.pallas_call(
        lstm_dense_kernel,
        out_shape=jax.ShapeDtypeStruct((B, T), jnp.float32),
        in_specs=[vmem, vmem, vmem, vmem, vmem, smem],
        out_specs=vmem,
        compiler_params=pltpu.CompilerParams(
            vmem_limit_bytes=32 * 1024 * 1024),      # footprint ~10 KiB; safe on v5e/v6e/v7x
    )(x, wih_row, whh_t, bias_row, wd_row, bd)

    return out_2d[:, :, None]                         # (B, T, 1); free reshape under jit


def lstm_dense_reference(x, params):
    """Pure-JAX reference matching torch.nn.LSTM(batch_first) + Linear (f32)."""
    w_ih, w_hh, b_ih, b_hh, w_d, b_d = params
    B, T, _ = x.shape
    H = w_hh.shape[1]
    hp = jax.lax.Precision.HIGHEST
    h = jnp.zeros((B, H), jnp.float32)
    c = jnp.zeros((B, H), jnp.float32)
    ys = []
    for t in range(T):
        gates = (jnp.dot(x[:, t, :], w_ih.T, precision=hp) + b_ih
                 + jnp.dot(h, w_hh.T, precision=hp) + b_hh)
        i_g = jax.nn.sigmoid(gates[:, 0:H])
        f_g = jax.nn.sigmoid(gates[:, H:2 * H])
        g_g = jnp.tanh(gates[:, 2 * H:3 * H])
        o_g = jax.nn.sigmoid(gates[:, 3 * H:4 * H])
        c = f_g * c + i_g * g_g
        h = o_g * jnp.tanh(c)
        ys.append(jnp.dot(h, w_d.T, precision=hp) + b_d)
    return jnp.stack(ys, axis=1)                                   # (B, T, 1)


def init_params(key, hidden_size=32, input_size=1):
    """Deterministic init with the same parameter shapes as nn.LSTM + nn.Linear."""
    H = hidden_size
    k = 1.0 / jnp.sqrt(jnp.float32(H))
    keys = jax.random.split(key, 6)
    w_ih = jax.random.uniform(keys[0], (4 * H, input_size), jnp.float32, -k, k)
    w_hh = jax.random.uniform(keys[1], (4 * H, H), jnp.float32, -k, k)
    b_ih = jax.random.uniform(keys[2], (4 * H,), jnp.float32, -k, k)
    b_hh = jax.random.uniform(keys[3], (4 * H,), jnp.float32, -k, k)
    w_d = jax.random.uniform(keys[4], (1, H), jnp.float32, -k, k)
    b_d = jax.random.uniform(keys[5], (1,), jnp.float32, -k, k)
    return (w_ih, w_hh, b_ih, b_hh, w_d, b_d)


if __name__ == "__main__":
    key = jax.random.PRNGKey(0)
    k_param, k_x = jax.random.split(key)

    batch, seq, hidden = 2, 8, 32
    params = init_params(k_param, hidden_size=hidden)
    x = jax.random.normal(k_x, (batch, seq, 1), jnp.float32)

    ref = jax.block_until_ready(lstm_dense_reference(x, params))

    # Default path: bf16 MXU operands on the recurrent matmul, f32 accumulation and
    # f32 gate/state math. Gate error compounds over T, so validate at a loose tolerance.
    prepared = prepare_params(params)                              # one-time param prep
    out = jax.block_until_ready(simple_model_forward(x, prepared))
    assert out.shape == (batch, seq, 1)
    assert jnp.max(jnp.abs(out - ref)) < 1e-1, "bf16-MXU path mismatch vs reference"

    # Strict-parity path: f32 MXU operands, tight match vs the f32 reference.
    prepared_f32 = prepare_params(params, matmul_dtype=jnp.float32)
    out_f32 = jax.block_until_ready(simple_model_forward(x, prepared_f32))
    assert jnp.allclose(out_f32, ref, rtol=1e-4, atol=1e-4), "f32 path mismatch vs reference"

    print("KERNEL_OK")
</pallas_src>

<mosaic_0001>
module attributes {stable_mosaic.version = 11 : i64} {
  func.func @lstm_dense_kernel(%arg0: memref<2x8x1xf32, #tpu.memory_space<vmem>>, %arg1: memref<1x128xf32, #tpu.memory_space<vmem>>, %arg2: memref<32x128xbf16, #tpu.memory_space<vmem>>, %arg3: memref<1x128xf32, #tpu.memory_space<vmem>>, %arg4: memref<1x32xf32, #tpu.memory_space<vmem>>, %arg5: memref<1xf32, #tpu.memory_space<smem>>, %arg6: memref<2x8xf32, #tpu.memory_space<vmem>>) attributes {dimension_semantics = [], scalar_prefetch = 0 : i64, scratch_operands = 0 : i64, tpu.core_type = #tpu.core_type<tc>} {
    %c0 = arith.constant 0 : index
    %c0_0 = arith.constant 0 : index
    %c0_1 = arith.constant 0 : index
    %0 = vector.load %arg0[%c0, %c0_0, %c0_1] : memref<2x8x1xf32, #tpu.memory_space<vmem>>, vector<2x8x1xf32>
    %c0_2 = arith.constant 0 : index
    %c0_3 = arith.constant 0 : index
    %1 = vector.load %arg1[%c0_2, %c0_3] : memref<1x128xf32, #tpu.memory_space<vmem>>, vector<1x128xf32>
    %2 = vector.shape_cast %1 : vector<1x128xf32> to vector<1x1x128xf32>
    %3 = vector.broadcast %0 : vector<2x8x1xf32> to vector<2x8x128xf32>
    %4 = vector.broadcast %2 : vector<1x1x128xf32> to vector<2x8x128xf32>
    %5 = arith.mulf %3, %4 : vector<2x8x128xf32>
    %c0_4 = arith.constant 0 : index
    %c0_5 = arith.constant 0 : index
    %6 = vector.load %arg3[%c0_4, %c0_5] : memref<1x128xf32, #tpu.memory_space<vmem>>, vector<1x128xf32>
    %7 = vector.shape_cast %6 : vector<1x128xf32> to vector<1x1x128xf32>
    %8 = vector.broadcast %7 : vector<1x1x128xf32> to vector<2x8x128xf32>
    %9 = arith.addf %5, %8 : vector<2x8x128xf32>
    %c0_6 = arith.constant 0 : index
    %c0_7 = arith.constant 0 : index
    %10 = vector.load %arg2[%c0_6, %c0_7] : memref<32x128xbf16, #tpu.memory_space<vmem>>, vector<32x128xbf16>
    %c0_8 = arith.constant 0 : index
    %c0_9 = arith.constant 0 : index
    %11 = vector.load %arg4[%c0_8, %c0_9] : memref<1x32xf32, #tpu.memory_space<vmem>>, vector<1x32xf32>
    %c0_10 = arith.constant 0 : index
    %12 = memref.load %arg5[%c0_10] : memref<1xf32, #tpu.memory_space<smem>>
    %cst = arith.constant 0.000000e+00 : f32
    %13 = vector.broadcast %cst : f32 to vector<2x32xf32>
    %cst_11 = arith.constant 0.000000e+00 : f32
    %14 = vector.broadcast %cst_11 : f32 to vector<2x32xf32>
    %15 = vector.extract_strided_slice %9 {offsets = [0, 0, 0], sizes = [2, 1, 128], strides = [1, 1, 1]} : vector<2x8x128xf32> to vector<2x1x128xf32>
    %16 = vector.shape_cast %15 : vector<2x1x128xf32> to vector<2x128xf32>
    %17 = arith.truncf %13 : vector<2x32xf32> to vector<2x32xbf16>
    %cst_12 = arith.constant dense<0.000000e+00> : vector<2x128xf32>
    %18 = tpu.matmul %17, %10, %cst_12 {dimension_numbers = #tpu.dot_dimension_numbers<[1], [0], [0], [1], [0, 0, 1, 1], [], []>} : vector<2x32xbf16>, vector<32x128xbf16>, vector<2x128xf32> -> vector<2x128xf32>
    %19 = arith.addf %16, %18 : vector<2x128xf32>
    %20 = arith.negf %19 : vector<2x128xf32>
    %21 = math.exp %20 : vector<2x128xf32>
    %cst_13 = arith.constant 1.000000e+00 : f32
    %22 = vector.broadcast %cst_13 : f32 to vector<2x128xf32>
    %23 = arith.addf %22, %21 : vector<2x128xf32>
    %24 = arith.divf %22, %23 : vector<2x128xf32>
    %25 = math.tanh %19 : vector<2x128xf32>
    %26 = vector.extract_strided_slice %24 {offsets = [0, 0], sizes = [2, 32], strides = [1, 1]} : vector<2x128xf32> to vector<2x32xf32>
    %27 = vector.extract_strided_slice %24 {offsets = [0, 32], sizes = [2, 32], strides = [1, 1]} : vector<2x128xf32> to vector<2x32xf32>
    %28 = vector.extract_strided_slice %25 {offsets = [0, 64], sizes = [2, 32], strides = [1, 1]} : vector<2x128xf32> to vector<2x32xf32>
    %29 = vector.extract_strided_slice %24 {offsets = [0, 96], sizes = [2, 32], strides = [1, 1]} : vector<2x128xf32> to vector<2x32xf32>
    %30 = arith.mulf %27, %14 : vector<2x32xf32>
    %31 = arith.mulf %26, %28 : vector<2x32xf32>
    %32 = arith.addf %30, %31 : vector<2x32xf32>
    %33 = math.tanh %32 : vector<2x32xf32>
    %34 = arith.mulf %29, %33 : vector<2x32xf32>
    %35 = vector.broadcast %11 : vector<1x32xf32> to vector<2x32xf32>
    %36 = arith.mulf %34, %35 : vector<2x32xf32>
    %cst_14 = arith.constant dense<0.000000e+00> : vector<2xf32>
    %37 = vector.multi_reduction <add>, %36, %cst_14 [1] : vector<2x32xf32> to vector<2xf32>
    %38 = vector.shape_cast %37 : vector<2xf32> to vector<2x1xf32>
    %39 = vector.extract_strided_slice %9 {offsets = [0, 1, 0], sizes = [2, 1, 128], strides = [1, 1, 1]} : vector<2x8x128xf32> to vector<2x1x128xf32>
    %40 = vector.shape_cast %39 : vector<2x1x128xf32> to vector<2x128xf32>
    %41 = arith.truncf %34 : vector<2x32xf32> to vector<2x32xbf16>
    %cst_15 = arith.constant dense<0.000000e+00> : vector<2x128xf32>
    %42 = tpu.matmul %41, %10, %cst_15 {dimension_numbers = #tpu.dot_dimension_numbers<[1], [0], [0], [1], [0, 0, 1, 1], [], []>} : vector<2x32xbf16>, vector<32x128xbf16>, vector<2x128xf32> -> vector<2x128xf32>
    %43 = arith.addf %40, %42 : vector<2x128xf32>
    %44 = arith.negf %43 : vector<2x128xf32>
    %45 = math.exp %44 : vector<2x128xf32>
    %cst_16 = arith.constant 1.000000e+00 : f32
    %46 = vector.broadcast %cst_16 : f32 to vector<2x128xf32>
    %47 = arith.addf %46, %45 : vector<2x128xf32>
    %48 = arith.divf %46, %47 : vector<2x128xf32>
    %49 = math.tanh %43 : vector<2x128xf32>
    %50 = vector.extract_strided_slice %48 {offsets = [0, 0], sizes = [2, 32], strides = [1, 1]} : vector<2x128xf32> to vector<2x32xf32>
    %51 = vector.extract_strided_slice %48 {offsets = [0, 32], sizes = [2, 32], strides = [1, 1]} : vector<2x128xf32> to vector<2x32xf32>
    %52 = vector.extract_strided_slice %49 {offsets = [0, 64], sizes = [2, 32], strides = [1, 1]} : vector<2x128xf32> to vector<2x32xf32>
    %53 = vector.extract_strided_slice %48 {offsets = [0, 96], sizes = [2, 32], strides = [1, 1]} : vector<2x128xf32> to vector<2x32xf32>
    %54 = arith.mulf %51, %32 : vector<2x32xf32>
    %55 = arith.mulf %50, %52 : vector<2x32xf32>
    %56 = arith.addf %54, %55 : vector<2x32xf32>
    %57 = math.tanh %56 : vector<2x32xf32>
    %58 = arith.mulf %53, %57 : vector<2x32xf32>
    %59 = vector.broadcast %11 : vector<1x32xf32> to vector<2x32xf32>
    %60 = arith.mulf %58, %59 : vector<2x32xf32>
    %cst_17 = arith.constant dense<0.000000e+00> : vector<2xf32>
    %61 = vector.multi_reduction <add>, %60, %cst_17 [1] : vector<2x32xf32> to vector<2xf32>
    %62 = vector.shape_cast %61 : vector<2xf32> to vector<2x1xf32>
    %63 = vector.extract_strided_slice %9 {offsets = [0, 2, 0], sizes = [2, 1, 128], strides = [1, 1, 1]} : vector<2x8x128xf32> to vector<2x1x128xf32>
    %64 = vector.shape_cast %63 : vector<2x1x128xf32> to vector<2x128xf32>
    %65 = arith.truncf %58 : vector<2x32xf32> to vector<2x32xbf16>
    %cst_18 = arith.constant dense<0.000000e+00> : vector<2x128xf32>
    %66 = tpu.matmul %65, %10, %cst_18 {dimension_numbers = #tpu.dot_dimension_numbers<[1], [0], [0], [1], [0, 0, 1, 1], [], []>} : vector<2x32xbf16>, vector<32x128xbf16>, vector<2x128xf32> -> vector<2x128xf32>
    %67 = arith.addf %64, %66 : vector<2x128xf32>
    %68 = arith.negf %67 : vector<2x128xf32>
    %69 = math.exp %68 : vector<2x128xf32>
    %cst_19 = arith.constant 1.000000e+00 : f32
    %70 = vector.broadcast %cst_19 : f32 to vector<2x128xf32>
    %71 = arith.addf %70, %69 : vector<2x128xf32>
    %72 = arith.divf %70, %71 : vector<2x128xf32>
    %73 = math.tanh %67 : vector<2x128xf32>
    %74 = vector.extract_strided_slice %72 {offsets = [0, 0], sizes = [2, 32], strides = [1, 1]} : vector<2x128xf32> to vector<2x32xf32>
    %75 = vector.extract_strided_slice %72 {offsets = [0, 32], sizes = [2, 32], strides = [1, 1]} : vector<2x128xf32> to vector<2x32xf32>
    %76 = vector.extract_strided_slice %73 {offsets = [0, 64], sizes = [2, 32], strides = [1, 1]} : vector<2x128xf32> to vector<2x32xf32>
    %77 = vector.extract_strided_slice %72 {offsets = [0, 96], sizes = [2, 32], strides = [1, 1]} : vector<2x128xf32> to vector<2x32xf32>
    %78 = arith.mulf %75, %56 : vector<2x32xf32>
    %79 = arith.mulf %74, %76 : vector<2x32xf32>
    %80 = arith.addf %78, %79 : vector<2x32xf32>
    %81 = math.tanh %80 : vector<2x32xf32>
    %82 = arith.mulf %77, %81 : vector<2x32xf32>
    %83 = vector.broadcast %11 : vector<1x32xf32> to vector<2x32xf32>
    %84 = arith.mulf %82, %83 : vector<2x32xf32>
    %cst_20 = arith.constant dense<0.000000e+00> : vector<2xf32>
    %85 = vector.multi_reduction <add>, %84, %cst_20 [1] : vector<2x32xf32> to vector<2xf32>
    %86 = vector.shape_cast %85 : vector<2xf32> to vector<2x1xf32>
    %87 = vector.extract_strided_slice %9 {offsets = [0, 3, 0], sizes = [2, 1, 128], strides = [1, 1, 1]} : vector<2x8x128xf32> to vector<2x1x128xf32>
    %88 = vector.shape_cast %87 : vector<2x1x128xf32> to vector<2x128xf32>
    %89 = arith.truncf %82 : vector<2x32xf32> to vector<2x32xbf16>
    %cst_21 = arith.constant dense<0.000000e+00> : vector<2x128xf32>
    %90 = tpu.matmul %89, %10, %cst_21 {dimension_numbers = #tpu.dot_dimension_numbers<[1], [0], [0], [1], [0, 0, 1, 1], [], []>} : vector<2x32xbf16>, vector<32x128xbf16>, vector<2x128xf32> -> vector<2x128xf32>
    %91 = arith.addf %88, %90 : vector<2x128xf32>
    %92 = arith.negf %91 : vector<2x128xf32>
    %93 = math.exp %92 : vector<2x128xf32>
    %cst_22 = arith.constant 1.000000e+00 : f32
    %94 = vector.broadcast %cst_22 : f32 to vector<2x128xf32>
    %95 = arith.addf %94, %93 : vector<2x128xf32>
    %96 = arith.divf %94, %95 : vector<2x128xf32>
    %97 = math.tanh %91 : vector<2x128xf32>
    %98 = vector.extract_strided_slice %96 {offsets = [0, 0], sizes = [2, 32], strides = [1, 1]} : vector<2x128xf32> to vector<2x32xf32>
    %99 = vector.extract_strided_slice %96 {offsets = [0, 32], sizes = [2, 32], strides = [1, 1]} : vector<2x128xf32> to vector<2x32xf32>
    %100 = vector.extract_strided_slice %97 {offsets = [0, 64], sizes = [2, 32], strides = [1, 1]} : vector<2x128xf32> to vector<2x32xf32>
    %101 = vector.extract_strided_slice %96 {offsets = [0, 96], sizes = [2, 32], strides = [1, 1]} : vector<2x128xf32> to vector<2x32xf32>
    %102 = arith.mulf %99, %80 : vector<2x32xf32>
    %103 = arith.mulf %98, %100 : vector<2x32xf32>
    %104 = arith.addf %102, %103 : vector<2x32xf32>
    %105 = math.tanh %104 : vector<2x32xf32>
    %106 = arith.mulf %101, %105 : vector<2x32xf32>
    %107 = vector.broadcast %11 : vector<1x32xf32> to vector<2x32xf32>
    %108 = arith.mulf %106, %107 : vector<2x32xf32>
    %cst_23 = arith.constant dense<0.000000e+00> : vector<2xf32>
    %109 = vector.multi_reduction <add>, %108, %cst_23 [1] : vector<2x32xf32> to vector<2xf32>
    %110 = vector.shape_cast %109 : vector<2xf32> to vector<2x1xf32>
    %111 = vector.extract_strided_slice %9 {offsets = [0, 4, 0], sizes = [2, 1, 128], strides = [1, 1, 1]} : vector<2x8x128xf32> to vector<2x1x128xf32>
    %112 = vector.shape_cast %111 : vector<2x1x128xf32> to vector<2x128xf32>
    %113 = arith.truncf %106 : vector<2x32xf32> to vector<2x32xbf16>
    %cst_24 = arith.constant dense<0.000000e+00> : vector<2x128xf32>
    %114 = tpu.matmul %113, %10, %cst_24 {dimension_numbers = #tpu.dot_dimension_numbers<[1], [0], [0], [1], [0, 0, 1, 1], [], []>} : vector<2x32xbf16>, vector<32x128xbf16>, vector<2x128xf32> -> vector<2x128xf32>
    %115 = arith.addf %112, %114 : vector<2x128xf32>
    %116 = arith.negf %115 : vector<2x128xf32>
    %117 = math.exp %116 : vector<2x128xf32>
    %cst_25 = arith.constant 1.000000e+00 : f32
    %118 = vector.broadcast %cst_25 : f32 to vector<2x128xf32>
    %119 = arith.addf %118, %117 : vector<2x128xf32>
    %120 = arith.divf %118, %119 : vector<2x128xf32>
    %121 = math.tanh %115 : vector<2x128xf32>
    %122 = vector.extract_strided_slice %120 {offsets = [0, 0], sizes = [2, 32], strides = [1, 1]} : vector<2x128xf32> to vector<2x32xf32>
    %123 = vector.extract_strided_slice %120 {offsets = [0, 32], sizes = [2, 32], strides = [1, 1]} : vector<2x128xf32> to vector<2x32xf32>
    %124 = vector.extract_strided_slice %121 {offsets = [0, 64], sizes = [2, 32], strides = [1, 1]} : vector<2x128xf32> to vector<2x32xf32>
    %125 = vector.extract_strided_slice %120 {offsets = [0, 96], sizes = [2, 32], strides = [1, 1]} : vector<2x128xf32> to vector<2x32xf32>
    %126 = arith.mulf %123, %104 : vector<2x32xf32>
    %127 = arith.mulf %122, %124 : vector<2x32xf32>
    %128 = arith.addf %126, %127 : vector<2x32xf32>
    %129 = math.tanh %128 : vector<2x32xf32>
    %130 = arith.mulf %125, %129 : vector<2x32xf32>
    %131 = vector.broadcast %11 : vector<1x32xf32> to vector<2x32xf32>
    %132 = arith.mulf %130, %131 : vector<2x32xf32>
    %cst_26 = arith.constant dense<0.000000e+00> : vector<2xf32>
    %133 = vector.multi_reduction <add>, %132, %cst_26 [1] : vector<2x32xf32> to vector<2xf32>
    %134 = vector.shape_cast %133 : vector<2xf32> to vector<2x1xf32>
    %135 = vector.extract_strided_slice %9 {offsets = [0, 5, 0], sizes = [2, 1, 128], strides = [1, 1, 1]} : vector<2x8x128xf32> to vector<2x1x128xf32>
    %136 = vector.shape_cast %135 : vector<2x1x128xf32> to vector<2x128xf32>
    %137 = arith.truncf %130 : vector<2x32xf32> to vector<2x32xbf16>
    %cst_27 = arith.constant dense<0.000000e+00> : vector<2x128xf32>
    %138 = tpu.matmul %137, %10, %cst_27 {dimension_numbers = #tpu.dot_dimension_numbers<[1], [0], [0], [1], [0, 0, 1, 1], [], []>} : vector<2x32xbf16>, vector<32x128xbf16>, vector<2x128xf32> -> vector<2x128xf32>
    %139 = arith.addf %136, %138 : vector<2x128xf32>
    %140 = arith.negf %139 : vector<2x128xf32>
    %141 = math.exp %140 : vector<2x128xf32>
    %cst_28 = arith.constant 1.000000e+00 : f32
    %142 = vector.broadcast %cst_28 : f32 to vector<2x128xf32>
    %143 = arith.addf %142, %141 : vector<2x128xf32>
    %144 = arith.divf %142, %143 : vector<2x128xf32>
    %145 = math.tanh %139 : vector<2x128xf32>
    %146 = vector.extract_strided_slice %144 {offsets = [0, 0], sizes = [2, 32], strides = [1, 1]} : vector<2x128xf32> to vector<2x32xf32>
    %147 = vector.extract_strided_slice %144 {offsets = [0, 32], sizes = [2, 32], strides = [1, 1]} : vector<2x128xf32> to vector<2x32xf32>
    %148 = vector.extract_strided_slice %145 {offsets = [0, 64], sizes = [2, 32], strides = [1, 1]} : vector<2x128xf32> to vector<2x32xf32>
    %149 = vector.extract_strided_slice %144 {offsets = [0, 96], sizes = [2, 32], strides = [1, 1]} : vector<2x128xf32> to vector<2x32xf32>
    %150 = arith.mulf %147, %128 : vector<2x32xf32>
    %151 = arith.mulf %146, %148 : vector<2x32xf32>
    %152 = arith.addf %150, %151 : vector<2x32xf32>
    %153 = math.tanh %152 : vector<2x32xf32>
    %154 = arith.mulf %149, %153 : vector<2x32xf32>
    %155 = vector.broadcast %11 : vector<1x32xf32> to vector<2x32xf32>
    %156 = arith.mulf %154, %155 : vector<2x32xf32>
    %cst_29 = arith.constant dense<0.000000e+00> : vector<2xf32>
    %157 = vector.multi_reduction <add>, %156, %cst_29 [1] : vector<2x32xf32> to vector<2xf32>
    %158 = vector.shape_cast %157 : vector<2xf32> to vector<2x1xf32>
    %159 = vector.extract_strided_slice %9 {offsets = [0, 6, 0], sizes = [2, 1, 128], strides = [1, 1, 1]} : vector<2x8x128xf32> to vector<2x1x128xf32>
    %160 = vector.shape_cast %159 : vector<2x1x128xf32> to vector<2x128xf32>
    %161 = arith.truncf %154 : vector<2x32xf32> to vector<2x32xbf16>
    %cst_30 = arith.constant dense<0.000000e+00> : vector<2x128xf32>
    %162 = tpu.matmul %161, %10, %cst_30 {dimension_numbers = #tpu.dot_dimension_numbers<[1], [0], [0], [1], [0, 0, 1, 1], [], []>} : vector<2x32xbf16>, vector<32x128xbf16>, vector<2x128xf32> -> vector<2x128xf32>
    %163 = arith.addf %160, %162 : vector<2x128xf32>
    %164 = arith.negf %163 : vector<2x128xf32>
    %165 = math.exp %164 : vector<2x128xf32>
    %cst_31 = arith.constant 1.000000e+00 : f32
    %166 = vector.broadcast %cst_31 : f32 to vector<2x128xf32>
    %167 = arith.addf %166, %165 : vector<2x128xf32>
    %168 = arith.divf %166, %167 : vector<2x128xf32>
    %169 = math.tanh %163 : vector<2x128xf32>
    %170 = vector.extract_strided_slice %168 {offsets = [0, 0], sizes = [2, 32], strides = [1, 1]} : vector<2x128xf32> to vector<2x32xf32>
    %171 = vector.extract_strided_slice %168 {offsets = [0, 32], sizes = [2, 32], strides = [1, 1]} : vector<2x128xf32> to vector<2x32xf32>
    %172 = vector.extract_strided_slice %169 {offsets = [0, 64], sizes = [2, 32], strides = [1, 1]} : vector<2x128xf32> to vector<2x32xf32>
    %173 = vector.extract_strided_slice %168 {offsets = [0, 96], sizes = [2, 32], strides = [1, 1]} : vector<2x128xf32> to vector<2x32xf32>
    %174 = arith.mulf %171, %152 : vector<2x32xf32>
    %175 = arith.mulf %170, %172 : vector<2x32xf32>
    %176 = arith.addf %174, %175 : vector<2x32xf32>
    %177 = math.tanh %176 : vector<2x32xf32>
    %178 = arith.mulf %173, %177 : vector<2x32xf32>
    %179 = vector.broadcast %11 : vector<1x32xf32> to vector<2x32xf32>
    %180 = arith.mulf %178, %179 : vector<2x32xf32>
    %cst_32 = arith.constant dense<0.000000e+00> : vector<2xf32>
    %181 = vector.multi_reduction <add>, %180, %cst_32 [1] : vector<2x32xf32> to vector<2xf32>
    %182 = vector.shape_cast %181 : vector<2xf32> to vector<2x1xf32>
    %183 = vector.extract_strided_slice %9 {offsets = [0, 7, 0], sizes = [2, 1, 128], strides = [1, 1, 1]} : vector<2x8x128xf32> to vector<2x1x128xf32>
    %184 = vector.shape_cast %183 : vector<2x1x128xf32> to vector<2x128xf32>
    %185 = arith.truncf %178 : vector<2x32xf32> to vector<2x32xbf16>
    %cst_33 = arith.constant dense<0.000000e+00> : vector<2x128xf32>
    %186 = tpu.matmul %185, %10, %cst_33 {dimension_numbers = #tpu.dot_dimension_numbers<[1], [0], [0], [1], [0, 0, 1, 1], [], []>} : vector<2x32xbf16>, vector<32x128xbf16>, vector<2x128xf32> -> vector<2x128xf32>
    %187 = arith.addf %184, %186 : vector<2x128xf32>
    %188 = arith.negf %187 : vector<2x128xf32>
    %189 = math.exp %188 : vector<2x128xf32>
    %cst_34 = arith.constant 1.000000e+00 : f32
    %190 = vector.broadcast %cst_34 : f32 to vector<2x128xf32>
    %191 = arith.addf %190, %189 : vector<2x128xf32>
    %192 = arith.divf %190, %191 : vector<2x128xf32>
    %193 = math.tanh %187 : vector<2x128xf32>
    %194 = vector.extract_strided_slice %192 {offsets = [0, 0], sizes = [2, 32], strides = [1, 1]} : vector<2x128xf32> to vector<2x32xf32>
    %195 = vector.extract_strided_slice %192 {offsets = [0, 32], sizes = [2, 32], strides = [1, 1]} : vector<2x128xf32> to vector<2x32xf32>
    %196 = vector.extract_strided_slice %193 {offsets = [0, 64], sizes = [2, 32], strides = [1, 1]} : vector<2x128xf32> to vector<2x32xf32>
    %197 = vector.extract_strided_slice %192 {offsets = [0, 96], sizes = [2, 32], strides = [1, 1]} : vector<2x128xf32> to vector<2x32xf32>
    %198 = arith.mulf %195, %176 : vector<2x32xf32>
    %199 = arith.mulf %194, %196 : vector<2x32xf32>
    %200 = arith.addf %198, %199 : vector<2x32xf32>
    %201 = math.tanh %200 : vector<2x32xf32>
    %202 = arith.mulf %197, %201 : vector<2x32xf32>
    %203 = vector.broadcast %11 : vector<1x32xf32> to vector<2x32xf32>
    %204 = arith.mulf %202, %203 : vector<2x32xf32>
    %cst_35 = arith.constant dense<0.000000e+00> : vector<2xf32>
    %205 = vector.multi_reduction <add>, %204, %cst_35 [1] : vector<2x32xf32> to vector<2xf32>
    %206 = vector.shape_cast %205 : vector<2xf32> to vector<2x1xf32>
    %207 = tpu.concatenate %38, %62, %86, %110, %134, %158, %182, %206 in 1 : vector<2x1xf32>, vector<2x1xf32>, vector<2x1xf32>, vector<2x1xf32>, vector<2x1xf32>, vector<2x1xf32>, vector<2x1xf32>, vector<2x1xf32> -> vector<2x8xf32>
    %208 = vector.broadcast %12 : f32 to vector<2x8xf32>
    %209 = arith.addf %207, %208 : vector<2x8xf32>
    %c0_36 = arith.constant 0 : index
    %c0_37 = arith.constant 0 : index
    %210 = vector.load %arg6[%c0_36, %c0_37] : memref<2x8xf32, #tpu.memory_space<vmem>>, vector<2x8xf32>
    tpu.vector_store %arg6[%c0_36, %c0_37], %209 {strides = array<i32>} : memref<2x8xf32, #tpu.memory_space<vmem>>, vector<2x8xf32>,
    return
  }
}

</mosaic_0001>

<llo_original>
// kernel: simple_model_forward.1
$region0: #{simple_model_forward.1}
  #allocation0 [shape = 'u32[]', space=smem, size = 0x4, offset = 0x4, fixed_abs, tag = 'smem constant byte address 0x4 - core index']
  #allocation1 [shape = 'u32[144,128]{1,0:T(1,128)}', space=vmem, size = 0x12000, scoped, tag = 'internal scratch']
  #allocation2 [shape = 'f32[1]{0:T(128)S(6)}', space=smem, size = 0x200, scoped, tag = 'scoped memory for simple_model_forward.1']
  %s0 = inlined_call_operand.vmem [shape: f32[2,8,1], index: 0, kind: input, shape index: {}]
  %s1 = inlined_call_operand.vmem [shape: f32[1,128], index: 1, kind: input, shape index: {}]
  %s2 = inlined_call_operand.vmem [shape: bf16[32,128], index: 2, kind: input, shape index: {}]
  %s3 = inlined_call_operand.vmem [shape: f32[1,128], index: 3, kind: input, shape index: {}]
  %s4 = inlined_call_operand.vmem [shape: f32[1,32], index: 4, kind: input, shape index: {}]
  %s5 = inlined_call_operand.<no memory space> [shape: f32[1], index: 5, kind: input, shape index: {}]
  %s6 = inlined_call_operand.hbm [shape: f32[2,8], index: 6, kind: output, shape index: {}]
  %s7 = sld [smem:[#allocation0]]
  $region34: #{simple_model_forward.1} parent=0
    _
  %s9 = ssub.s32 1, %s7
  %s10 = scalar_select 0, %s9, %s7
  %11 = sst [smem:[#allocation2]] %s5
  $region1: #{simple_model_forward.1} parent=0
    #allocation3 [shape = 'u8[1024]{0}', space=vmem, size = 0x400, scoped, tag = 'output window, operand 0, single buffered']
    #allocation4 [shape = 's32[1]{0}', space=sflag, size = 0x4, scoped, tag = 'scoped memory for simple_model_forward.1']
    %12 = vsyncpa [#allocation4], 0
    // Predicated region
    $region2: #{simple_model_forward.1} parent=1 // pred_check
      _
    $region3: #{simple_model_forward.1} parent=1 // pred_check_branch
      %14 = sbr.rel (0) target = $region5
    $region4: #{simple_model_forward.1} parent=1 // pred_region
      _
    $region5: #{simple_model_forward.1} parent=1 // pred_fallthru
      _
    // Predicated region
    $region6: #{simple_model_forward.1} parent=1 // pred_check
      _
    $region7: #{simple_model_forward.1} parent=1 // pred_check_branch
      %16 = sbr.rel (0) target = $region9
    $region8: #{simple_model_forward.1} parent=1 // pred_region
      _
    $region9: #{simple_model_forward.1} parent=1 // pred_fallthru
      _
    // Predicated region
    $region10: #{simple_model_forward.1} parent=1 // pred_check
      _
    $region11: #{simple_model_forward.1} parent=1 // pred_check_branch
      %18 = sbr.rel (0) target = $region13
    $region12: #{simple_model_forward.1} parent=1 // pred_region
      _
    $region13: #{simple_model_forward.1} parent=1 // pred_fallthru
      _
    // Predicated region
    $region14: #{simple_model_forward.1} parent=1 // pred_check
      _
    $region15: #{simple_model_forward.1} parent=1 // pred_check_branch
      %20 = sbr.rel (0) target = $region17
    $region16: #{simple_model_forward.1} parent=1 // pred_region
      _
    $region17: #{simple_model_forward.1} parent=1 // pred_fallthru
      _
    // Predicated region
    $region18: #{simple_model_forward.1} parent=1 // pred_check
      _
    $region19: #{simple_model_forward.1} parent=1 // pred_check_branch
      %22 = sbr.rel (0) target = $region21
    $region20: #{simple_model_forward.1} parent=1 // pred_region
      _
    $region21: #{simple_model_forward.1} parent=1 // pred_fallthru
      _
    // Predicated region
    $region22: #{simple_model_forward.1} parent=1 // pred_check
      _
    $region23: #{simple_model_forward.1} parent=1 // pred_check_branch
      %24 = sbr.rel (0) target = $region25
    $region24: #{simple_model_forward.1} parent=1 // pred_region
      _
    $region25: #{simple_model_forward.1} parent=1 // pred_fallthru
      _
    %v26 = vld [vmem:[%s0] sm:$0xff]
    %v27 = vld [vmem:[%s0 + $0x8] sm:$0xff]
    %v28 = vld [vmem:[%s1] sm:$0x1]
    %30 = vset.pattern.permute.xlu0 0
    %31 = vperm.xlu0 %30, %v26
    %v32 = vpop.permute.xlu0 %31
    %35 = vset.pattern.permute.xlu0 0
    %36 = vperm.xlu0 %35, %v27
    %v37 = vpop.permute.xlu0 %36
    %v40 = vlaneseq
    %v41 = vshrl.u32 %v40, 7
    %v42 = vsub.s32 0, %v41
    %v43 = vrot.slane %v28, %v42
    %v45 = vmul.f32 %v32, %v43
    %v46 = vmul.f32 %v37, %v43
    %v47 = vld [vmem:[%s3] sm:$0x1]
    %v49 = vlaneseq
    %v50 = vshrl.u32 %v49, 7
    %v51 = vsub.s32 0, %v50
    %v52 = vrot.slane %v47, %v51
    %v54 = vadd.f32 %v45, %v52
    %v55 = vadd.f32 %v46, %v52
    %v56 = vld [vmem:[%s2] sm:$0xf]
    %v57 = vld [vmem:[%s2 + $0x4] sm:$0xf]
    %v58 = vld [vmem:[%s2 + $0x8] sm:$0xf]
    %v59 = vld [vmem:[%s2 + $0xc] sm:$0xf]
    %v60 = vld [vmem:[%s4] sm:$0x1]
    %s61 = sld [smem:[#allocation2]]
    %v66 = vunpack.c.l.b16 %v56
    %v67 = vunpack.c.l.b16 %v57
    %v68 = vunpack.c.l.b16 %v58
    %v69 = vunpack.c.l.b16 %v59
    %v70 = vpack.c.b16 %v67, %v66
    %v71 = vpack.c.b16 %v69, %v68
    %vm74 = vcmask 261120
    %v76 = vsel %vm74, 0, 0
    %78 = vmatprep.subr.bf16.mxu0 0
    %79 = vmatpush1.bf16.msra.mxu0 %v70
    %80 = vmatprep.subr.bf16.mxu0 0
    %81 = vmatpush1.bf16.msra.mxu0 %v71
    %82 = vmatprep.subr.bf16.mxu0 0
    %83 = vmatpush1.bf16.msra.mxu0 0
    %84 = vmatprep.subr.bf16.mxu0 0
    %85 = vmatpush1.bf16.msra.mxu0 0
    %86 = vmatprep.subr.bf16.mxu0 0
    %87 = vmatpush1.bf16.msra.mxu0 0
    %88 = vmatprep.subr.bf16.mxu0 0
    %89 = vmatpush1.bf16.msra.mxu0 0
    %90 = vmatprep.subr.bf16.mxu0 0
    %91 = vmatpush1.bf16.msra.mxu0 0
    %92 = vmatprep.subr.bf16.mxu0 0
    %93 = vmatpush1.bf16.msra.mxu0 0
    %94 = vmatprep.subr.bf16.mxu0 0
    %95 = vmatpush1.bf16.msra.mxu0 0
    %96 = vmatprep.subr.bf16.mxu0 0
    %97 = vmatpush1.bf16.msra.mxu0 0
    %98 = vmatprep.subr.bf16.mxu0 0
    %99 = vmatpush1.bf16.msra.mxu0 0
    %100 = vmatprep.subr.bf16.mxu0 0
    %101 = vmatpush1.bf16.msra.mxu0 0
    %102 = vmatprep.subr.bf16.mxu0 0
    %103 = vmatpush1.bf16.msra.mxu0 0
    %104 = vmatprep.subr.bf16.mxu0 0
    %105 = vmatpush1.bf16.msra.mxu0 0
    %106 = vmatprep.subr.bf16.mxu0 0
    %107 = vmatpush1.bf16.msra.mxu0 0
    %108 = vmatprep.subr.bf16.mxu0 0
    %109 = vmatpush1.bf16.msra.mxu0 0
    %110 = vmatprep.mubr.bf16.mxu0 0
    %111 = vmatmul.mubr.bf16.gmra.mrb[0].mxu0 %v76
    %v112 = vpop.f32.mrb[0].mxu0
    %v113 = vadd.f32 0.0, %v112
    %v114 = vpop.f32.mrb[0].mxu0
    %v115 = vpop.f32.mrb[0].mxu0
    %v116 = vpop.f32.mrb[0].mxu0
    %117 = vdwg.mxu0
    %v119 = vrot.slane %v113, 1
    %v122 = vadd.f32 %v54, %v113
    %v123 = vadd.f32 %v55, %v119
    %v124 = vxor.u32 %v122, 2147483648
    %v125 = vxor.u32 %v123, 2147483648
    %v126 = vmul.f32 %v124, 1.442695
    %v127 = vpow.pop %v126
    %v128 = vmul.f32 %v125, 1.442695
    %v129 = vpow.pop %v128
    %v130 = vadd.f32 %v127, 1.0
    %v131 = vadd.f32 %v129, 1.0
    %v132 = vrcp.pop %v130
    %v133 = vmul.f32 1.0, %v132
    %v134 = vrcp.pop %v131
    %v135 = vmul.f32 1.0, %v134
    %v136 = vtanh.pop %v122
    %v137 = vtanh.pop %v123
    %v138 = vmul.f32 %v133, 0.0
    %v139 = vmul.f32 %v135, 0.0
    %142 = vrot.lane.b32.xlu0 %v136, 64
    %v143 = vpop.permute.xlu0 %142
    %144 = vrot.lane.b32.xlu0 %v137, 64
    %v145 = vpop.permute.xlu0 %144
    %v148 = vmul.f32 %v133, %v143
    %v149 = vmul.f32 %v135, %v145
    %152 = vrot.lane.b32.xlu0 %v148, 32
    %v153 = vpop.permute.xlu0 %152
    %154 = vrot.lane.b32.xlu0 %v149, 32
    %v155 = vpop.permute.xlu0 %154
    %v158 = vadd.f32 %v138, %v153
    %v159 = vadd.f32 %v139, %v155
    %v160 = vtanh.pop %v158
    %v161 = vtanh.pop %v159
    %164 = vrot.lane.b32.xlu0 %v160, 64
    %v165 = vpop.permute.xlu0 %164
    %166 = vrot.lane.b32.xlu0 %v161, 64
    %v167 = vpop.permute.xlu0 %166
    %v170 = vmul.f32 %v133, %v165
    %v171 = vmul.f32 %v135, %v167
    %v173 = vlaneseq
    %v174 = vshrl.u32 %v173, 7
    %v175 = vsub.s32 0, %v174
    %v176 = vrot.slane %v60, %v175
    %177 = vrot.lane.b32.xlu0 %v176, 96
    %v178 = vpop.permute.xlu0 %177
    %v180 = vmul.f32 %v170, %v178
    %v181 = vmul.f32 %v171, %v178
    %v184 = vrot.slane %v181, 7
    %vm185 = vcmask 1041409
    %v186 = vsel %vm185, %v184, %v180
    %187 = vrot.lane.b32.xlu0 %v186, 32
    %v188 = vpop.permute.xlu0 %187
    %vm190 = vcmask 254976
    %v191 = vsel %vm190, %v188, 0.0
    %192 = vadd.xlane.f32.xlu0 %v191
    %v193 = vpop.xlane.xlu0 %192
    %v194 = vpack.c.bf16 %v170, %v170
    %v195 = vpack.c.bf16 %v171, %v171
    %v198 = vunpack.c.l.b16 %v194
    %v199 = vunpack.c.l.b16 %v195
    %v200 = vrot.slane %v199, 7
    %v201 = vsel %vm185, %v200, %v198
    %v202 = vpack.c.b16 %v201, %v201
    %203 = vrot.lane.b32.xlu0 %v202, 32
    %v204 = vpop.permute.xlu0 %203
    %v206 = vsel %vm74, %v204, 0
    %208 = vmatprep.subr.bf16.mxu0 0
    %209 = vmatpush1.bf16.msra.mxu0 %v70
    %210 = vmatprep.subr.bf16.mxu0 0
    %211 = vmatpush1.bf16.msra.mxu0 %v71
    %212 = vmatprep.subr.bf16.mxu0 0
    %213 = vmatpush1.bf16.msra.mxu0 0
    %214 = vmatprep.subr.bf16.mxu0 0
    %215 = vmatpush1.bf16.msra.mxu0 0
    %216 = vmatprep.subr.bf16.mxu0 0
    %217 = vmatpush1.bf16.msra.mxu0 0
    %218 = vmatprep.subr.bf16.mxu0 0
    %219 = vmatpush1.bf16.msra.mxu0 0
    %220 = vmatprep.subr.bf16.mxu0 0
    %221 = vmatpush1.bf16.msra.mxu0 0
    %222 = vmatprep.subr.bf16.mxu0 0
    %223 = vmatpush1.bf16.msra.mxu0 0
    %224 = vmatprep.subr.bf16.mxu0 0
    %225 = vmatpush1.bf16.msra.mxu0 0
    %226 = vmatprep.subr.bf16.mxu0 0
    %227 = vmatpush1.bf16.msra.mxu0 0
    %228 = vmatprep.subr.bf16.mxu0 0
    %229 = vmatpush1.bf16.msra.mxu0 0
    %230 = vmatprep.subr.bf16.mxu0 0
    %231 = vmatpush1.bf16.msra.mxu0 0
    %232 = vmatprep.subr.bf16.mxu0 0
    %233 = vmatpush1.bf16.msra.mxu0 0
    %234 = vmatprep.subr.bf16.mxu0 0
    %235 = vmatpush1.bf16.msra.mxu0 0
    %236 = vmatprep.subr.bf16.mxu0 0
    %237 = vmatpush1.bf16.msra.mxu0 0
    %238 = vmatprep.subr.bf16.mxu0 0
    %239 = vmatpush1.bf16.msra.mxu0 0
    %240 = vmatprep.mubr.bf16.mxu0 0
    %241 = vmatmul.mubr.bf16.gmra.mrb[0].mxu0 %v206
    %v242 = vpop.f32.mrb[0].mxu0
    %v243 = vadd.f32 0.0, %v242
    %v244 = vpop.f32.mrb[0].mxu0
    %v245 = vpop.f32.mrb[0].mxu0
    %v246 = vpop.f32.mrb[0].mxu0
    %247 = vdwg.mxu0
    %v249 = vrot.slane %v243, 7
    %v252 = vadd.f32 %v54, %v249
    %v253 = vadd.f32 %v55, %v243
    %v254 = vxor.u32 %v252, 2147483648
    %v255 = vxor.u32 %v253, 2147483648
    %v256 = vmul.f32 %v254, 1.442695
    %v257 = vpow.pop %v256
    %v258 = vmul.f32 %v255, 1.442695
    %v259 = vpow.pop %v258
    %v260 = vadd.f32 %v257, 1.0
    %v261 = vadd.f32 %v259, 1.0
    %v262 = vrcp.pop %v260
    %v263 = vmul.f32 1.0, %v262
    %v264 = vrcp.pop %v261
    %v265 = vmul.f32 1.0, %v264
    %v266 = vtanh.pop %v252
    %v267 = vtanh.pop %v253
    %v270 = vrot.slane %v158, 7
    %v271 = vrot.slane %v159, 7
    %v274 = vmul.f32 %v263, %v270
    %v275 = vmul.f32 %v265, %v271
    %278 = vrot.lane.b32.xlu0 %v266, 64
    %v279 = vpop.permute.xlu0 %278
    %280 = vrot.lane.b32.xlu0 %v267, 64
    %v281 = vpop.permute.xlu0 %280
    %v284 = vmul.f32 %v263, %v279
    %v285 = vmul.f32 %v265, %v281
    %288 = vrot.lane.b32.xlu0 %v284, 32
    %v289 = vpop.permute.xlu0 %288
    %290 = vrot.lane.b32.xlu0 %v285, 32
    %v291 = vpop.permute.xlu0 %290
    %v294 = vadd.f32 %v274, %v289
    %v295 = vadd.f32 %v275, %v291
    %v296 = vtanh.pop %v294
    %v297 = vtanh.pop %v295
    %300 = vrot.lane.b32.xlu0 %v296, 64
    %v301 = vpop.permute.xlu0 %300
    %302 = vrot.lane.b32.xlu0 %v297, 64
    %v303 = vpop.permute.xlu0 %302
    %v306 = vmul.f32 %v263, %v301
    %v307 = vmul.f32 %v265, %v303
    %v308 = vmul.f32 %v306, %v178
    %v309 = vmul.f32 %v307, %v178
    %v312 = vrot.slane %v309, 7
    %vm313 = vcmask 1042434
    %v314 = vsel %vm313, %v312, %v308
    %315 = vrot.lane.b32.xlu0 %v314, 32
    %v316 = vpop.permute.xlu0 %315
    %vm318 = vcmask 256001
    %v319 = vsel %vm318, %v316, 0.0
    %320 = vadd.xlane.f32.xlu0 %v319
    %v321 = vpop.xlane.xlu0 %320
    %v322 = vpack.c.bf16 %v306, %v306
    %v323 = vpack.c.bf16 %v307, %v307
    %v326 = vunpack.c.l.b16 %v322
    %v327 = vunpack.c.l.b16 %v323
    %v328 = vrot.slane %v326, 1
    %v329 = vsel %vm185, %v327, %v328
    %v330 = vpack.c.b16 %v329, %v329
    %331 = vrot.lane.b32.xlu0 %v330, 32
    %v332 = vpop.permute.xlu0 %331
    %v334 = vsel %vm74, %v332, 0
    %336 = vmatprep.subr.bf16.mxu0 0
    %337 = vmatpush1.bf16.msra.mxu0 %v70
    %338 = vmatprep.subr.bf16.mxu0 0
    %339 = vmatpush1.bf16.msra.mxu0 %v71
    %340 = vmatprep.subr.bf16.mxu0 0
    %341 = vmatpush1.bf16.msra.mxu0 0
    %342 = vmatprep.subr.bf16.mxu0 0
    %343 = vmatpush1.bf16.msra.mxu0 0
    %344 = vmatprep.subr.bf16.mxu0 0
    %345 = vmatpush1.bf16.msra.mxu0 0
    %346 = vmatprep.subr.bf16.mxu0 0
    %347 = vmatpush1.bf16.msra.mxu0 0
    %348 = vmatprep.subr.bf16.mxu0 0
    %349 = vmatpush1.bf16.msra.mxu0 0
    %350 = vmatprep.subr.bf16.mxu0 0
    %351 = vmatpush1.bf16.msra.mxu0 0
    %352 = vmatprep.subr.bf16.mxu0 0
    %353 = vmatpush1.bf16.msra.mxu0 0
    %354 = vmatprep.subr.bf16.mxu0 0
    %355 = vmatpush1.bf16.msra.mxu0 0
    %356 = vmatprep.subr.bf16.mxu0 0
    %357 = vmatpush1.bf16.msra.mxu0 0
    %358 = vmatprep.subr.bf16.mxu0 0
    %359 = vmatpush1.bf16.msra.mxu0 0
    %360 = vmatprep.subr.bf16.mxu0 0
    %361 = vmatpush1.bf16.msra.mxu0 0
    %362 = vmatprep.subr.bf16.mxu0 0
    %363 = vmatpush1.bf16.msra.mxu0 0
    %364 = vmatprep.subr.bf16.mxu0 0
    %365 = vmatpush1.bf16.msra.mxu0 0
    %366 = vmatprep.subr.bf16.mxu0 0
    %367 = vmatpush1.bf16.msra.mxu0 0
    %368 = vmatprep.mubr.bf16.mxu0 0
    %369 = vmatmul.mubr.bf16.gmra.mrb[0].mxu0 %v334
    %v370 = vpop.f32.mrb[0].mxu0
    %v371 = vadd.f32 0.0, %v370
    %v372 = vpop.f32.mrb[0].mxu0
    %v373 = vpop.f32.mrb[0].mxu0
    %v374 = vpop.f32.mrb[0].mxu0
    %375 = vdwg.mxu0
    %v377 = vrot.slane %v371, 6
    %v378 = vrot.slane %v371, 7
    %v381 = vadd.f32 %v54, %v377
    %v382 = vadd.f32 %v55, %v378
    %v383 = vxor.u32 %v381, 2147483648
    %v384 = vxor.u32 %v382, 2147483648
    %v385 = vmul.f32 %v383, 1.442695
    %v386 = vpow.pop %v385
    %v387 = vmul.f32 %v384, 1.442695
    %v388 = vpow.pop %v387
    %v389 = vadd.f32 %v386, 1.0
    %v390 = vadd.f32 %v388, 1.0
    %v391 = vrcp.pop %v389
    %v392 = vmul.f32 1.0, %v391
    %v393 = vrcp.pop %v390
    %v394 = vmul.f32 1.0, %v393
    %v395 = vtanh.pop %v381
    %v396 = vtanh.pop %v382
    %v399 = vrot.slane %v294, 7
    %v400 = vrot.slane %v295, 7
    %v403 = vmul.f32 %v392, %v399
    %v404 = vmul.f32 %v394, %v400
    %407 = vrot.lane.b32.xlu0 %v395, 64
    %v408 = vpop.permute.xlu0 %407
    %409 = vrot.lane.b32.xlu0 %v396, 64
    %v410 = vpop.permute.xlu0 %409
    %v413 = vmul.f32 %v392, %v408
    %v414 = vmul.f32 %v394, %v410
    %417 = vrot.lane.b32.xlu0 %v413, 32
    %v418 = vpop.permute.xlu0 %417
    %419 = vrot.lane.b32.xlu0 %v414, 32
    %v420 = vpop.permute.xlu0 %419
    %v423 = vadd.f32 %v403, %v418
    %v424 = vadd.f32 %v404, %v420
    %v425 = vtanh.pop %v423
    %v426 = vtanh.pop %v424
    %429 = vrot.lane.b32.xlu0 %v425, 64
    %v430 = vpop.permute.xlu0 %429
    %431 = vrot.lane.b32.xlu0 %v426, 64
    %v432 = vpop.permute.xlu0 %431
    %v435 = vmul.f32 %v392, %v430
    %v436 = vmul.f32 %v394, %v432
    %v437 = vmul.f32 %v435, %v178
    %v438 = vmul.f32 %v436, %v178
    %v441 = vrot.slane %v438, 7
    %vm442 = vcmask 1043459
    %v443 = vsel %vm442, %v441, %v437
    %444 = vrot.lane.b32.xlu0 %v443, 32
    %v445 = vpop.permute.xlu0 %444
    %vm447 = vcmask 257026
    %v448 = vsel %vm447, %v445, 0.0
    %449 = vadd.xlane.f32.xlu0 %v448
    %v450 = vpop.xlane.xlu0 %449
    %v451 = vpack.c.bf16 %v435, %v435
    %v452 = vpack.c.bf16 %v436, %v436
    %v455 = vunpack.c.l.b16 %v451
    %v456 = vunpack.c.l.b16 %v452
    %v457 = vrot.slane %v455, 2
    %v458 = vrot.slane %v456, 1
    %v459 = vsel %vm185, %v458, %v457
    %v460 = vpack.c.b16 %v459, %v459
    %461 = vrot.lane.b32.xlu0 %v460, 32
    %v462 = vpop.permute.xlu0 %461
    %v464 = vsel %vm74, %v462, 0
    %466 = vmatprep.subr.bf16.mxu0 0
    %467 = vmatpush1.bf16.msra.mxu0 %v70
    %468 = vmatprep.subr.bf16.mxu0 0
    %469 = vmatpush1.bf16.msra.mxu0 %v71
    %470 = vmatprep.subr.bf16.mxu0 0
    %471 = vmatpush1.bf16.msra.mxu0 0
    %472 = vmatprep.subr.bf16.mxu0 0
    %473 = vmatpush1.bf16.msra.mxu0 0
    %474 = vmatprep.subr.bf16.mxu0 0
    %475 = vmatpush1.bf16.msra.mxu0 0
    %476 = vmatprep.subr.bf16.mxu0 0
    %477 = vmatpush1.bf16.msra.mxu0 0
    %478 = vmatprep.subr.bf16.mxu0 0
    %479 = vmatpush1.bf16.msra.mxu0 0
    %480 = vmatprep.subr.bf16.mxu0 0
    %481 = vmatpush1.bf16.msra.mxu0 0
    %482 = vmatprep.subr.bf16.mxu0 0
    %483 = vmatpush1.bf16.msra.mxu0 0
    %484 = vmatprep.subr.bf16.mxu0 0
    %485 = vmatpush1.bf16.msra.mxu0 0
    %486 = vmatprep.subr.bf16.mxu0 0
    %487 = vmatpush1.bf16.msra.mxu0 0
    %488 = vmatprep.subr.bf16.mxu0 0
    %489 = vmatpush1.bf16.msra.mxu0 0
    %490 = vmatprep.subr.bf16.mxu0 0
    %491 = vmatpush1.bf16.msra.mxu0 0
    %492 = vmatprep.subr.bf16.mxu0 0
    %493 = vmatpush1.bf16.msra.mxu0 0
    %494 = vmatprep.subr.bf16.mxu0 0
    %495 = vmatpush1.bf16.msra.mxu0 0
    %496 = vmatprep.subr.bf16.mxu0 0
    %497 = vmatpush1.bf16.msra.mxu0 0
    %498 = vmatprep.mubr.bf16.mxu0 0
    %499 = vmatmul.mubr.bf16.gmra.mrb[0].mxu0 %v464
    %v500 = vpop.f32.mrb[0].mxu0
    %v501 = vadd.f32 0.0, %v500
    %v502 = vpop.f32.mrb[0].mxu0
    %v503 = vpop.f32.mrb[0].mxu0
    %v504 = vpop.f32.mrb[0].mxu0
    %505 = vdwg.mxu0
    %v507 = vrot.slane %v501, 5
    %v508 = vrot.slane %v501, 6
    %v511 = vadd.f32 %v54, %v507
    %v512 = vadd.f32 %v55, %v508
    %v513 = vxor.u32 %v511, 2147483648
    %v514 = vxor.u32 %v512, 2147483648
    %v515 = vmul.f32 %v513, 1.442695
    %v516 = vpow.pop %v515
    %v517 = vmul.f32 %v514, 1.442695
    %v518 = vpow.pop %v517
    %v519 = vadd.f32 %v516, 1.0
    %v520 = vadd.f32 %v518, 1.0
    %v521 = vrcp.pop %v519
    %v522 = vmul.f32 1.0, %v521
    %v523 = vrcp.pop %v520
    %v524 = vmul.f32 1.0, %v523
    %v525 = vtanh.pop %v511
    %v526 = vtanh.pop %v512
    %v529 = vrot.slane %v423, 7
    %v530 = vrot.slane %v424, 7
    %v533 = vmul.f32 %v522, %v529
    %v534 = vmul.f32 %v524, %v530
    %537 = vrot.lane.b32.xlu0 %v525, 64
    %v538 = vpop.permute.xlu0 %537
    %539 = vrot.lane.b32.xlu0 %v526, 64
    %v540 = vpop.permute.xlu0 %539
    %v543 = vmul.f32 %v522, %v538
    %v544 = vmul.f32 %v524, %v540
    %547 = vrot.lane.b32.xlu0 %v543, 32
    %v548 = vpop.permute.xlu0 %547
    %549 = vrot.lane.b32.xlu0 %v544, 32
    %v550 = vpop.permute.xlu0 %549
    %v553 = vadd.f32 %v533, %v548
    %v554 = vadd.f32 %v534, %v550
    %v555 = vtanh.pop %v553
    %v556 = vtanh.pop %v554
    %559 = vrot.lane.b32.xlu0 %v555, 64
    %v560 = vpop.permute.xlu0 %559
    %561 = vrot.lane.b32.xlu0 %v556, 64
    %v562 = vpop.permute.xlu0 %561
    %v565 = vmul.f32 %v522, %v560
    %v566 = vmul.f32 %v524, %v562
    %v567 = vmul.f32 %v565, %v178
    %v568 = vmul.f32 %v566, %v178
    %v571 = vrot.slane %v568, 7
    %vm572 = vcmask 1044484
    %v573 = vsel %vm572, %v571, %v567
    %574 = vrot.lane.b32.xlu0 %v573, 32
    %v575 = vpop.permute.xlu0 %574
    %vm577 = vcmask 258051
    %v578 = vsel %vm577, %v575, 0.0
    %579 = vadd.xlane.f32.xlu0 %v578
    %v580 = vpop.xlane.xlu0 %579
    %v581 = vpack.c.bf16 %v565, %v565
    %v582 = vpack.c.bf16 %v566, %v566
    %v585 = vunpack.c.l.b16 %v581
    %v586 = vunpack.c.l.b16 %v582
    %v587 = vrot.slane %v585, 3
    %v588 = vrot.slane %v586, 2
    %v589 = vsel %vm185, %v588, %v587
    %v590 = vpack.c.b16 %v589, %v589
    %591 = vrot.lane.b32.xlu0 %v590, 32
    %v592 = vpop.permute.xlu0 %591
    %v594 = vsel %vm74, %v592, 0
    %596 = vmatprep.subr.bf16.mxu0 0
    %597 = vmatpush1.bf16.msra.mxu0 %v70
    %598 = vmatprep.subr.bf16.mxu0 0
    %599 = vmatpush1.bf16.msra.mxu0 %v71
    %600 = vmatprep.subr.bf16.mxu0 0
    %601 = vmatpush1.bf16.msra.mxu0 0
    %602 = vmatprep.subr.bf16.mxu0 0
    %603 = vmatpush1.bf16.msra.mxu0 0
    %604 = vmatprep.subr.bf16.mxu0 0
    %605 = vmatpush1.bf16.msra.mxu0 0
    %606 = vmatprep.subr.bf16.mxu0 0
    %607 = vmatpush1.bf16.msra.mxu0 0
    %608 = vmatprep.subr.bf16.mxu0 0
    %609 = vmatpush1.bf16.msra.mxu0 0
    %610 = vmatprep.subr.bf16.mxu0 0
    %611 = vmatpush1.bf16.msra.mxu0 0
    %612 = vmatprep.subr.bf16.mxu0 0
    %613 = vmatpush1.bf16.msra.mxu0 0
    %614 = vmatprep.subr.bf16.mxu0 0
    %615 = vmatpush1.bf16.msra.mxu0 0
    %616 = vmatprep.subr.bf16.mxu0 0
    %617 = vmatpush1.bf16.msra.mxu0 0
    %618 = vmatprep.subr.bf16.mxu0 0
    %619 = vmatpush1.bf16.msra.mxu0 0
    %620 = vmatprep.subr.bf16.mxu0 0
    %621 = vmatpush1.bf16.msra.mxu0 0
    %622 = vmatprep.subr.bf16.mxu0 0
    %623 = vmatpush1.bf16.msra.mxu0 0
    %624 = vmatprep.subr.bf16.mxu0 0
    %625 = vmatpush1.bf16.msra.mxu0 0
    %626 = vmatprep.subr.bf16.mxu0 0
    %627 = vmatpush1.bf16.msra.mxu0 0
    %628 = vmatprep.mubr.bf16.mxu0 0
    %629 = vmatmul.mubr.bf16.gmra.mrb[0].mxu0 %v594
    %v630 = vpop.f32.mrb[0].mxu0
    %v631 = vadd.f32 0.0, %v630
    %v632 = vpop.f32.mrb[0].mxu0
    %v633 = vpop.f32.mrb[0].mxu0
    %v634 = vpop.f32.mrb[0].mxu0
    %635 = vdwg.mxu0
    %v637 = vrot.slane %v631, 4
    %v638 = vrot.slane %v631, 5
    %v641 = vadd.f32 %v54, %v637
    %v642 = vadd.f32 %v55, %v638
    %v643 = vxor.u32 %v641, 2147483648
    %v644 = vxor.u32 %v642, 2147483648
    %v645 = vmul.f32 %v643, 1.442695
    %v646 = vpow.pop %v645
    %v647 = vmul.f32 %v644, 1.442695
    %v648 = vpow.pop %v647
    %v649 = vadd.f32 %v646, 1.0
    %v650 = vadd.f32 %v648, 1.0
    %v651 = vrcp.pop %v649
    %v652 = vmul.f32 1.0, %v651
    %v653 = vrcp.pop %v650
    %v654 = vmul.f32 1.0, %v653
    %v655 = vtanh.pop %v641
    %v656 = vtanh.pop %v642
    %v659 = vrot.slane %v553, 7
    %v660 = vrot.slane %v554, 7
    %v663 = vmul.f32 %v652, %v659
    %v664 = vmul.f32 %v654, %v660
    %667 = vrot.lane.b32.xlu0 %v655, 64
    %v668 = vpop.permute.xlu0 %667
    %669 = vrot.lane.b32.xlu0 %v656, 64
    %v670 = vpop.permute.xlu0 %669
    %v673 = vmul.f32 %v652, %v668
    %v674 = vmul.f32 %v654, %v670
    %677 = vrot.lane.b32.xlu0 %v673, 32
    %v678 = vpop.permute.xlu0 %677
    %679 = vrot.lane.b32.xlu0 %v674, 32
    %v680 = vpop.permute.xlu0 %679
    %v683 = vadd.f32 %v663, %v678
    %v684 = vadd.f32 %v664, %v680
    %v685 = vtanh.pop %v683
    %v686 = vtanh.pop %v684
    %689 = vrot.lane.b32.xlu0 %v685, 64
    %v690 = vpop.permute.xlu0 %689
    %691 = vrot.lane.b32.xlu0 %v686, 64
    %v692 = vpop.permute.xlu0 %691
    %v695 = vmul.f32 %v652, %v690
    %v696 = vmul.f32 %v654, %v692
    %v697 = vmul.f32 %v695, %v178
    %v698 = vmul.f32 %v696, %v178
    %v701 = vrot.slane %v698, 7
    %vm702 = vcmask 1045509
    %v703 = vsel %vm702, %v701, %v697
    %704 = vrot.lane.b32.xlu0 %v703, 32
    %v705 = vpop.permute.xlu0 %704
    %vm707 = vcmask 259076
    %v708 = vsel %vm707, %v705, 0.0
    %709 = vadd.xlane.f32.xlu0 %v708
    %v710 = vpop.xlane.xlu0 %709
    %v711 = vpack.c.bf16 %v695, %v695
    %v712 = vpack.c.bf16 %v696, %v696
    %v715 = vunpack.c.l.b16 %v711
    %v716 = vunpack.c.l.b16 %v712
    %v717 = vrot.slane %v715, 4
    %v718 = vrot.slane %v716, 3
    %v719 = vsel %vm185, %v718, %v717
    %v720 = vpack.c.b16 %v719, %v719
    %721 = vrot.lane.b32.xlu0 %v720, 32
    %v722 = vpop.permute.xlu0 %721
    %v724 = vsel %vm74, %v722, 0
    %726 = vmatprep.subr.bf16.mxu0 0
    %727 = vmatpush1.bf16.msra.mxu0 %v70
    %728 = vmatprep.subr.bf16.mxu0 0
    %729 = vmatpush1.bf16.msra.mxu0 %v71
    %730 = vmatprep.subr.bf16.mxu0 0
    %731 = vmatpush1.bf16.msra.mxu0 0
    %732 = vmatprep.subr.bf16.mxu0 0
    %733 = vmatpush1.bf16.msra.mxu0 0
    %734 = vmatprep.subr.bf16.mxu0 0
    %735 = vmatpush1.bf16.msra.mxu0 0
    %736 = vmatprep.subr.bf16.mxu0 0
    %737 = vmatpush1.bf16.msra.mxu0 0
    %738 = vmatprep.subr.bf16.mxu0 0
    %739 = vmatpush1.bf16.msra.mxu0 0
    %740 = vmatprep.subr.bf16.mxu0 0
    %741 = vmatpush1.bf16.msra.mxu0 0
    %742 = vmatprep.subr.bf16.mxu0 0
    %743 = vmatpush1.bf16.msra.mxu0 0
    %744 = vmatprep.subr.bf16.mxu0 0
    %745 = vmatpush1.bf16.msra.mxu0 0
    %746 = vmatprep.subr.bf16.mxu0 0
    %747 = vmatpush1.bf16.msra.mxu0 0
    %748 = vmatprep.subr.bf16.mxu0 0
    %749 = vmatpush1.bf16.msra.mxu0 0
    %750 = vmatprep.subr.bf16.mxu0 0
    %751 = vmatpush1.bf16.msra.mxu0 0
    %752 = vmatprep.subr.bf16.mxu0 0
    %753 = vmatpush1.bf16.msra.mxu0 0
    %754 = vmatprep.subr.bf16.mxu0 0
    %755 = vmatpush1.bf16.msra.mxu0 0
    %756 = vmatprep.subr.bf16.mxu0 0
    %757 = vmatpush1.bf16.msra.mxu0 0
    %758 = vmatprep.mubr.bf16.mxu0 0
    %759 = vmatmul.mubr.bf16.gmra.mrb[0].mxu0 %v724
    %v760 = vpop.f32.mrb[0].mxu0
    %v761 = vadd.f32 0.0, %v760
    %v762 = vpop.f32.mrb[0].mxu0
    %v763 = vpop.f32.mrb[0].mxu0
    %v764 = vpop.f32.mrb[0].mxu0
    %765 = vdwg.mxu0
    %v767 = vrot.slane %v761, 3
    %v768 = vrot.slane %v761, 4
    %v771 = vadd.f32 %v54, %v767
    %v772 = vadd.f32 %v55, %v768
    %v773 = vxor.u32 %v771, 2147483648
    %v774 = vxor.u32 %v772, 2147483648
    %v775 = vmul.f32 %v773, 1.442695
    %v776 = vpow.pop %v775
    %v777 = vmul.f32 %v774, 1.442695
    %v778 = vpow.pop %v777
    %v779 = vadd.f32 %v776, 1.0
    %v780 = vadd.f32 %v778, 1.0
    %v781 = vrcp.pop %v779
    %v782 = vmul.f32 1.0, %v781
    %v783 = vrcp.pop %v780
    %v784 = vmul.f32 1.0, %v783
    %v785 = vtanh.pop %v771
    %v786 = vtanh.pop %v772
    %v789 = vrot.slane %v683, 7
    %v790 = vrot.slane %v684, 7
    %v793 = vmul.f32 %v782, %v789
    %v794 = vmul.f32 %v784, %v790
    %797 = vrot.lane.b32.xlu0 %v785, 64
    %v798 = vpop.permute.xlu0 %797
    %799 = vrot.lane.b32.xlu0 %v786, 64
    %v800 = vpop.permute.xlu0 %799
    %v803 = vmul.f32 %v782, %v798
    %v804 = vmul.f32 %v784, %v800
    %807 = vrot.lane.b32.xlu0 %v803, 32
    %v808 = vpop.permute.xlu0 %807
    %809 = vrot.lane.b32.xlu0 %v804, 32
    %v810 = vpop.permute.xlu0 %809
    %v813 = vadd.f32 %v793, %v808
    %v814 = vadd.f32 %v794, %v810
    %v815 = vtanh.pop %v813
    %v816 = vtanh.pop %v814
    %819 = vrot.lane.b32.xlu0 %v815, 64
    %v820 = vpop.permute.xlu0 %819
    %821 = vrot.lane.b32.xlu0 %v816, 64
    %v822 = vpop.permute.xlu0 %821
    %v825 = vmul.f32 %v782, %v820
    %v826 = vmul.f32 %v784, %v822
    %v827 = vmul.f32 %v825, %v178
    %v828 = vmul.f32 %v826, %v178
    %v831 = vrot.slane %v828, 7
    %vm832 = vcmask 1046534
    %v833 = vsel %vm832, %v831, %v827
    %834 = vrot.lane.b32.xlu0 %v833, 32
    %v835 = vpop.permute.xlu0 %834
    %vm837 = vcmask 260101
    %v838 = vsel %vm837, %v835, 0.0
    %839 = vadd.xlane.f32.xlu0 %v838
    %v840 = vpop.xlane.xlu0 %839
    %v841 = vpack.c.bf16 %v825, %v825
    %v842 = vpack.c.bf16 %v826, %v826
    %v845 = vunpack.c.l.b16 %v841
    %v846 = vunpack.c.l.b16 %v842
    %v847 = vrot.slane %v845, 5
    %v848 = vrot.slane %v846, 4
    %v849 = vsel %vm185, %v848, %v847
    %v850 = vpack.c.b16 %v849, %v849
    %851 = vrot.lane.b32.xlu0 %v850, 32
    %v852 = vpop.permute.xlu0 %851
    %v854 = vsel %vm74, %v852, 0
    %856 = vmatprep.subr.bf16.mxu0 0
    %857 = vmatpush1.bf16.msra.mxu0 %v70
    %858 = vmatprep.subr.bf16.mxu0 0
    %859 = vmatpush1.bf16.msra.mxu0 %v71
    %860 = vmatprep.subr.bf16.mxu0 0
    %861 = vmatpush1.bf16.msra.mxu0 0
    %862 = vmatprep.subr.bf16.mxu0 0
    %863 = vmatpush1.bf16.msra.mxu0 0
    %864 = vmatprep.subr.bf16.mxu0 0
    %865 = vmatpush1.bf16.msra.mxu0 0
    %866 = vmatprep.subr.bf16.mxu0 0
    %867 = vmatpush1.bf16.msra.mxu0 0
    %868 = vmatprep.subr.bf16.mxu0 0
    %869 = vmatpush1.bf16.msra.mxu0 0
    %870 = vmatprep.subr.bf16.mxu0 0
    %871 = vmatpush1.bf16.msra.mxu0 0
    %872 = vmatprep.subr.bf16.mxu0 0
    %873 = vmatpush1.bf16.msra.mxu0 0
    %874 = vmatprep.subr.bf16.mxu0 0
    %875 = vmatpush1.bf16.msra.mxu0 0
    %876 = vmatprep.subr.bf16.mxu0 0
    %877 = vmatpush1.bf16.msra.mxu0 0
    %878 = vmatprep.subr.bf16.mxu0 0
    %879 = vmatpush1.bf16.msra.mxu0 0
    %880 = vmatprep.subr.bf16.mxu0 0
    %881 = vmatpush1.bf16.msra.mxu0 0
    %882 = vmatprep.subr.bf16.mxu0 0
    %883 = vmatpush1.bf16.msra.mxu0 0
    %884 = vmatprep.subr.bf16.mxu0 0
    %885 = vmatpush1.bf16.msra.mxu0 0
    %886 = vmatprep.subr.bf16.mxu0 0
    %887 = vmatpush1.bf16.msra.mxu0 0
    %888 = vmatprep.mubr.bf16.mxu0 0
    %889 = vmatmul.mubr.bf16.gmra.mrb[0].mxu0 %v854
    %v890 = vpop.f32.mrb[0].mxu0
    %v891 = vadd.f32 0.0, %v890
    %v892 = vpop.f32.mrb[0].mxu0
    %v893 = vpop.f32.mrb[0].mxu0
    %v894 = vpop.f32.mrb[0].mxu0
    %895 = vdwg.mxu0
    %v897 = vrot.slane %v891, 2
    %v898 = vrot.slane %v891, 3
    %v901 = vadd.f32 %v54, %v897
    %v902 = vadd.f32 %v55, %v898
    %v903 = vxor.u32 %v901, 2147483648
    %v904 = vxor.u32 %v902, 2147483648
    %v905 = vmul.f32 %v903, 1.442695
    %v906 = vpow.pop %v905
    %v907 = vmul.f32 %v904, 1.442695
    %v908 = vpow.pop %v907
    %v909 = vadd.f32 %v906, 1.0
    %v910 = vadd.f32 %v908, 1.0
    %v911 = vrcp.pop %v909
    %v912 = vmul.f32 1.0, %v911
    %v913 = vrcp.pop %v910
    %v914 = vmul.f32 1.0, %v913
    %v915 = vtanh.pop %v901
    %v916 = vtanh.pop %v902
    %v919 = vrot.slane %v813, 7
    %v920 = vrot.slane %v814, 7
    %v923 = vmul.f32 %v912, %v919
    %v924 = vmul.f32 %v914, %v920
    %927 = vrot.lane.b32.xlu0 %v915, 64
    %v928 = vpop.permute.xlu0 %927
    %929 = vrot.lane.b32.xlu0 %v916, 64
    %v930 = vpop.permute.xlu0 %929
    %v933 = vmul.f32 %v912, %v928
    %v934 = vmul.f32 %v914, %v930
    %937 = vrot.lane.b32.xlu0 %v933, 32
    %v938 = vpop.permute.xlu0 %937
    %939 = vrot.lane.b32.xlu0 %v934, 32
    %v940 = vpop.permute.xlu0 %939
    %v943 = vadd.f32 %v923, %v938
    %v944 = vadd.f32 %v924, %v940
    %v945 = vtanh.pop %v943
    %v946 = vtanh.pop %v944
    %949 = vrot.lane.b32.xlu0 %v945, 64
    %v950 = vpop.permute.xlu0 %949
    %951 = vrot.lane.b32.xlu0 %v946, 64
    %v952 = vpop.permute.xlu0 %951
    %v955 = vmul.f32 %v912, %v950
    %v956 = vmul.f32 %v914, %v952
    %v957 = vmul.f32 %v955, %v178
    %v958 = vmul.f32 %v956, %v178
    %v961 = vrot.slane %v958, 7
    %vm962 = vcmask 1047559
    %v963 = vsel %vm962, %v961, %v957
    %964 = vrot.lane.b32.xlu0 %v963, 32
    %v965 = vpop.permute.xlu0 %964
    %vm967 = vcmask 261126
    %v968 = vsel %vm967, %v965, 0.0
    %969 = vadd.xlane.f32.xlu0 %v968
    %v970 = vpop.xlane.xlu0 %969
    %v971 = vpack.c.bf16 %v955, %v955
    %v972 = vpack.c.bf16 %v956, %v956
    %v975 = vunpack.c.l.b16 %v971
    %v976 = vunpack.c.l.b16 %v972
    %v977 = vrot.slane %v975, 6
    %v978 = vrot.slane %v976, 5
    %v979 = vsel %vm185, %v978, %v977
    %v980 = vpack.c.b16 %v979, %v979
    %981 = vrot.lane.b32.xlu0 %v980, 32
    %v982 = vpop.permute.xlu0 %981
    %v984 = vsel %vm74, %v982, 0
    %986 = vmatprep.subr.bf16.mxu0 0
    %987 = vmatpush1.bf16.msra.mxu0 %v70
    %988 = vmatprep.subr.bf16.mxu0 0
    %989 = vmatpush1.bf16.msra.mxu0 %v71
    %990 = vmatprep.subr.bf16.mxu0 0
    %991 = vmatpush1.bf16.msra.mxu0 0
    %992 = vmatprep.subr.bf16.mxu0 0
    %993 = vmatpush1.bf16.msra.mxu0 0
    %994 = vmatprep.subr.bf16.mxu0 0
    %995 = vmatpush1.bf16.msra.mxu0 0
    %996 = vmatprep.subr.bf16.mxu0 0
    %997 = vmatpush1.bf16.msra.mxu0 0
    %998 = vmatprep.subr.bf16.mxu0 0
    %999 = vmatpush1.bf16.msra.mxu0 0
    %1000 = vmatprep.subr.bf16.mxu0 0
    %1001 = vmatpush1.bf16.msra.mxu0 0
    %1002 = vmatprep.subr.bf16.mxu0 0
    %1003 = vmatpush1.bf16.msra.mxu0 0
    %1004 = vmatprep.subr.bf16.mxu0 0
    %1005 = vmatpush1.bf16.msra.mxu0 0
    %1006 = vmatprep.subr.bf16.mxu0 0
    %1007 = vmatpush1.bf16.msra.mxu0 0
    %1008 = vmatprep.subr.bf16.mxu0 0
    %1009 = vmatpush1.bf16.msra.mxu0 0
    %1010 = vmatprep.subr.bf16.mxu0 0
    %1011 = vmatpush1.bf16.msra.mxu0 0
    %1012 = vmatprep.subr.bf16.mxu0 0
    %1013 = vmatpush1.bf16.msra.mxu0 0
    %1014 = vmatprep.subr.bf16.mxu0 0
    %1015 = vmatpush1.bf16.msra.mxu0 0
    %1016 = vmatprep.subr.bf16.mxu0 0
    %1017 = vmatpush1.bf16.msra.mxu0 0
    %1018 = vmatprep.mubr.bf16.mxu0 0
    %1019 = vmatmul.mubr.bf16.gmra.mrb[0].mxu0 %v984
    %v1020 = vpop.f32.mrb[0].mxu0
    %v1021 = vadd.f32 0.0, %v1020
    %v1022 = vpop.f32.mrb[0].mxu0
    %v1023 = vpop.f32.mrb[0].mxu0
    %v1024 = vpop.f32.mrb[0].mxu0
    %1025 = vdwg.mxu0
    %v1027 = vrot.slane %v1021, 1
    %v1028 = vrot.slane %v1021, 2
    %v1031 = vadd.f32 %v54, %v1027
    %v1032 = vadd.f32 %v55, %v1028
    %v1033 = vxor.u32 %v1031, 2147483648
    %v1034 = vxor.u32 %v1032, 2147483648
    %v1035 = vmul.f32 %v1033, 1.442695
    %v1036 = vpow.pop %v1035
    %v1037 = vmul.f32 %v1034, 1.442695
    %v1038 = vpow.pop %v1037
    %v1039 = vadd.f32 %v1036, 1.0
    %v1040 = vadd.f32 %v1038, 1.0
    %v1041 = vrcp.pop %v1039
    %v1042 = vmul.f32 1.0, %v1041
    %v1043 = vrcp.pop %v1040
    %v1044 = vmul.f32 1.0, %v1043
    %v1045 = vtanh.pop %v1031
    %v1046 = vtanh.pop %v1032
    %v1049 = vrot.slane %v943, 7
    %v1050 = vrot.slane %v944, 7
    %v1053 = vmul.f32 %v1042, %v1049
    %v1054 = vmul.f32 %v1044, %v1050
    %1057 = vrot.lane.b32.xlu0 %v1045, 64
    %v1058 = vpop.permute.xlu0 %1057
    %1059 = vrot.lane.b32.xlu0 %v1046, 64
    %v1060 = vpop.permute.xlu0 %1059
    %v1063 = vmul.f32 %v1042, %v1058
    %v1064 = vmul.f32 %v1044, %v1060
    %1067 = vrot.lane.b32.xlu0 %v1063, 32
    %v1068 = vpop.permute.xlu0 %1067
    %1069 = vrot.lane.b32.xlu0 %v1064, 32
    %v1070 = vpop.permute.xlu0 %1069
    %v1073 = vadd.f32 %v1053, %v1068
    %v1074 = vadd.f32 %v1054, %v1070
    %v1075 = vtanh.pop %v1073
    %v1076 = vtanh.pop %v1074
    %1079 = vrot.lane.b32.xlu0 %v1075, 64
    %v1080 = vpop.permute.xlu0 %1079
    %1081 = vrot.lane.b32.xlu0 %v1076, 64
    %v1082 = vpop.permute.xlu0 %1081
    %v1085 = vmul.f32 %v1042, %v1080
    %v1086 = vmul.f32 %v1044, %v1082
    %v1087 = vmul.f32 %v1085, %v178
    %v1088 = vmul.f32 %v1086, %v178
    %v1091 = vrot.slane %v1088, 7
    %1092 = vrot.lane.b32.xlu0 %v1087, 32
    %v1093 = vpop.permute.xlu0 %1092
    %1094 = vrot.lane.b32.xlu0 %v1091, 32
    %v1095 = vpop.permute.xlu0 %1094
    %vm1098 = vcmask 261127
    %v1099 = vsel %vm1098, %v1093, 0.0
    %1100 = vadd.xlane.f32.xlu0 %v1099
    %v1101 = vpop.xlane.xlu0 %1100
    %vm1102 = vcmask 253952
    %v1103 = vsel %vm1102, %v1095, 0.0
    %1104 = vadd.xlane.f32.xlu0 %v1103
    %v1105 = vpop.xlane.xlu0 %1104
    %v1107 = vrot.slane %v321, 1
    %v1110 = vrot.slane %v450, 2
    %v1113 = vrot.slane %v580, 3
    %v1116 = vrot.slane %v710, 4
    %v1119 = vrot.slane %v840, 5
    %v1122 = vrot.slane %v970, 6
    %vm1126 = vcmask 1040384
    %v1127 = vrot.slane %v1101, 7
    %v1128 = vrot.slane %v1105, 7
    %v1129 = vsel %vm1126, %v1127, %v1128
    %vm1131 = vcmask 7168
    %v1132 = vsel %vm1131, %v193, %v1107
    %vm1133 = vcmask 15360
    %v1134 = vsel %vm1133, %v1132, %v1110
    %vm1135 = vcmask 23552
    %v1136 = vsel %vm1135, %v1134, %v1113
    %vm1137 = vcmask 31744
    %v1138 = vsel %vm1137, %v1136, %v1116
    %vm1139 = vcmask 39936
    %v1140 = vsel %vm1139, %v1138, %v1119
    %vm1141 = vcmask 48128
    %v1142 = vsel %vm1141, %v1140, %v1122
    %vm1143 = vcmask 56320
    %v1144 = vsel %vm1143, %v1142, %v1129
    %v1145 = vstv %s61
    %v1146 = vadd.f32 %v1144, %v1145
    %vm1147 = vcmask 58368
    %1148 = vst.msk [vmem:[#allocation3] sm:$0x3] %vm1147, %v1146
    // Predicated region
    $region26: #{simple_model_forward.1} parent=1 // pred_check
      _
    $region27: #{simple_model_forward.1} parent=1 // pred_check_branch
      %1150 = sbr.rel (0) target = $region29
    $region28: #{simple_model_forward.1} parent=1 // pred_region
      %s1152 = ssub.s32 32, 32
      %1153 = vsyncadd [#allocation4], %s1152
      %s1155 = sshll.u32 [#allocation3], 4
      %s1156 = int_to_ptr.vmem [resolvable:$true] %s1155
      %1158 = dma.vmem_to_hbm [thread:$0]  %s1156, 32, %s6, [#allocation4]
    $region29: #{simple_model_forward.1} parent=1 // pred_fallthru
      _
    // Predicated region
    $region30: #{simple_model_forward.1} parent=1 // pred_check
      _
    $region31: #{simple_model_forward.1} parent=1 // pred_check_branch
      %1160 = sbr.rel (0) target = $region33
    $region32: #{simple_model_forward.1} parent=1 // pred_region
      %1161 = dma.done [#allocation4], 32
    $region33: #{simple_model_forward.1} parent=1 // pred_fallthru
      _
    %1162 = vsyncpa [#allocation4], 1

</llo_original>
